<compile_context>
chip_gen: v6e
topology: v6e:2x2x1
jax: 0.10.0
libtpu: 0.0.40
codegen_flags: <defaults>
</compile_context>

<pallas_src>
import functools

import jax
import jax.numpy as jnp
from jax.experimental import pallas as pl
from jax.experimental.pallas import tpu as pltpu

_LANE = 128          # lane width / class-tile alignment
_SUBLANE_OUT = 8     # sublane depth of the per-tile partial-sum output block
# Per-TensorCore working-set budget for one (TB, TC) grid step:
# double-buffered input tile + ~2x f32 temporaries.  Conservative for v7x
# (64 MiB VMEM per TC, "parallel" batch tiles give each TC its own buffers);
# v5e/v6e (128 MiB) simply get extra headroom.
_WORK_BUDGET = 28 << 20


def _round_up(x, m):
    return ((x + m - 1) // m) * m


def _round_down(x, m):
    return (x // m) * m


def _lmcl_kernel(logits_ref, labels_ref, out_ref, m_ref, l_ref, t_ref, *,
                 scale, margin, batch, class_num, class_ragged):
    i = pl.program_id(0)          # batch-tile index ("parallel")
    j = pl.program_id(1)          # class-tile index ("arbitrary", innermost)
    tb, tc = logits_ref.shape

    @pl.when(j == 0)
    def _init():
        m_ref[...] = jnp.full(m_ref.shape, -jnp.inf, dtype=jnp.float32)
        l_ref[...] = jnp.zeros(l_ref.shape, dtype=jnp.float32)
        t_ref[...] = jnp.zeros(t_ref.shape, dtype=jnp.float32)

    x = logits_ref[...].astype(jnp.float32)           # (TB, TC) f32 in VMEM
    labels = labels_ref[...]                          # (TB, 1) int32

    # Boolean one-hot via lane iota compared against the label shifted into this
    # class tile's coordinates (per-row shift, no per-element add; no f32 one-hot).
    col = jax.lax.broadcasted_iota(jnp.int32, (tb, tc), 1)
    mask = col == (labels - j * tc)

    # Single select applies the margin; scale afterwards.
    adj = scale * jnp.where(mask, x - margin, x)      # (TB, TC) f32

    if class_ragged:
        # Ragged last class tile: padded columns must not enter the LSE.
        valid_col = (col + j * tc) < class_num
        adj = jnp.where(valid_col, adj, -jnp.inf)

    # Target-logit accumulator: reuse adj (nonzero only in the tile holding the
    # label), no second scale*(x - margin) pass.
    t_ref[...] += jnp.sum(jnp.where(mask, adj, 0.0), axis=-1, keepdims=True)

    # Online (streaming) log-sum-exp across class tiles.
    m_prev = m_ref[...]
    m_new = jnp.maximum(m_prev, jnp.max(adj, axis=-1, keepdims=True))
    l_ref[...] = (jnp.exp(m_prev - m_new) * l_ref[...]
                  + jnp.sum(jnp.exp(adj - m_new), axis=-1, keepdims=True))
    m_ref[...] = m_new

    @pl.when(j == pl.num_programs(1) - 1)
    def _finalize():
        per_row = m_ref[...] + jnp.log(l_ref[...]) - t_ref[...]    # (TB, 1)
        # Explicitly mask ragged tail rows (their data is undefined) before the
        # in-tile partial sum so the sum cannot be poisoned.
        row = jax.lax.broadcasted_iota(jnp.int32, (tb, 1), 0)
        valid_row = (i * tb + row) < batch
        tile_sum = jnp.sum(jnp.where(valid_row, per_row, 0.0))
        # Lane-dense (8, 128) partial-sum block: one full unmasked vector store
        # (tile_sum at [0, 0], zeros elsewhere); the wrapper sums the tiles.
        r = jax.lax.broadcasted_iota(jnp.int32, (_SUBLANE_OUT, _LANE), 0)
        c = jax.lax.broadcasted_iota(jnp.int32, (_SUBLANE_OUT, _LANE), 1)
        out_ref[...] = jnp.where((r == 0) & (c == 0), tile_sum, 0.0)


def lmcl_loss(y_pred, y_true, *, scale=2.0, margin=0.35,
              block_batch=None, block_class=None):
    """y_pred: (batch, class_num) float (f32/bf16); y_true: (batch,) int -> scalar."""
    batch, class_num = y_pred.shape
    labels = y_true.astype(jnp.int32).reshape(batch, 1)

    itemsize = jnp.dtype(y_pred.dtype).itemsize
    row_align = max(8, 32 // itemsize)        # sublane packing: f32 -> 8, bf16 -> 16

    # Bytes per (row, class) element of one grid step's working set:
    # double-buffered input tile (2*itemsize) + ~2x f32 temporaries (upcast/adj/exp).
    per_elem = 2 * itemsize + 2 * 4

    # ---- class tile: take the whole class dim if it fits the budget with a
    # minimal row tile; otherwise use lane-aligned class tiles (online LSE). ----
    if block_class is None:
        if class_num * row_align * per_elem <= _WORK_BUDGET:
            block_class = class_num
        else:
            block_class = max(_LANE, _round_down(
                _WORK_BUDGET // (row_align * per_elem), _LANE))
    block_class = int(min(block_class, class_num))
    if block_class < class_num:
        block_class = max(_LANE, _round_down(block_class, _LANE))
        block_class = min(block_class, class_num)
    num_class_tiles = int(pl.cdiv(class_num, block_class))
    class_ragged = (class_num % block_class) != 0

    # ---- batch tile: biggest tile within budget, but force >= ~8 tiles whenever
    # batch allows so the pipeline always double-buffers and megacore can shard. ----
    if block_batch is None:
        rows_budget = max(row_align, _round_down(
            _WORK_BUDGET // (block_class * per_elem), row_align))
        if batch > row_align:
            rows_cap = _round_up(int(pl.cdiv(batch, 8)), row_align)
            block_batch = max(row_align, min(rows_budget, rows_cap))
        else:
            block_batch = row_align
    block_batch = int(min(block_batch, batch))
    if block_batch < batch:
        block_batch = max(row_align, _round_down(block_batch, row_align))
        block_batch = min(block_batch, batch)
    num_batch_tiles = int(pl.cdiv(batch, block_batch))

    # ---- VMEM requirement (includes the implicit f32 temporaries); never clamp
    # below the real requirement.  Floor at the 32 MiB scoped default. ----
    needed = (2 * block_batch * block_class * itemsize   # dbl-buffered input tile
              + 2 * block_batch * block_class * 4        # f32 upcast / adj / exp
              + 2 * block_batch * 4                      # dbl-buffered labels
              + 2 * _SUBLANE_OUT * _LANE * 4             # dbl-buffered output block
              + 3 * block_batch * 4                      # m / l / t accumulators
              + (4 << 20))                               # Mosaic internal slack
    vmem_limit = int(max(needed, 32 << 20))

    kernel = functools.partial(
        _lmcl_kernel, scale=float(scale), margin=float(margin),
        batch=int(batch), class_num=int(class_num),
        class_ragged=bool(class_ragged))

    per_tile = pl.pallas_call(
        kernel,
        out_shape=jax.ShapeDtypeStruct(
            (num_batch_tiles * _SUBLANE_OUT, _LANE), jnp.float32),
        grid_spec=pltpu.PrefetchScalarGridSpec(
            num_scalar_prefetch=0,
            grid=(num_batch_tiles, num_class_tiles),
            in_specs=[
                pl.BlockSpec((block_batch, block_class), lambda i, j: (i, j)),
                pl.BlockSpec((block_batch, 1), lambda i, j: (i, 0)),
            ],
            out_specs=pl.BlockSpec((_SUBLANE_OUT, _LANE), lambda i, j: (i, 0)),
            scratch_shapes=[
                pltpu.VMEM((block_batch, 1), jnp.float32),   # running max  m
                pltpu.VMEM((block_batch, 1), jnp.float32),   # running sumexp l
                pltpu.VMEM((block_batch, 1), jnp.float32),   # target logit t
            ],
        ),
        compiler_params=pltpu.CompilerParams(
            dimension_semantics=("parallel", "arbitrary"),
            vmem_limit_bytes=vmem_limit,
        ),
    )(y_pred, labels)

    # Tiny reduction over num_batch_tiles lane-dense partial-sum blocks.
    return jnp.sum(per_tile) / batch


def _reference(y_pred, y_true, *, scale=2.0, margin=0.35):
    logits = y_pred.astype(jnp.float32)
    one_hot = jax.nn.one_hot(y_true, logits.shape[1], dtype=jnp.float32)
    adj = scale * (logits - margin * one_hot)
    logp = jax.nn.log_softmax(adj, axis=-1)
    return -jnp.mean(jnp.sum(one_hot * logp, axis=-1))


if __name__ == "__main__":
    key = jax.random.PRNGKey(0)
    k1, k2, k3, k4, k5, k6 = jax.random.split(key, 6)

    # Test 1: f32, multi-tile batch axis (3 tiles), single class tile.
    batch, class_num = 24, 256
    y_pred = jnp.tanh(jax.random.normal(k1, (batch, class_num), dtype=jnp.float32))
    y_true = jax.random.randint(k2, (batch,), 0, class_num, dtype=jnp.int32)
    loss = jax.block_until_ready(
        lmcl_loss(y_pred, y_true, scale=2.0, margin=0.35, block_batch=8))
    ref = _reference(y_pred, y_true, scale=2.0, margin=0.35)
    assert jnp.allclose(loss, ref, atol=1e-5, rtol=1e-5), (loss, ref)

    # Test 2: bf16 input (half the HBM bytes) + ragged batch tail (40 rows, 16-row tiles).
    batch2, class2 = 40, 384
    y_pred2 = jnp.tanh(
        jax.random.normal(k3, (batch2, class2), dtype=jnp.float32)).astype(jnp.bfloat16)
    y_true2 = jax.random.randint(k4, (batch2,), 0, class2, dtype=jnp.int32)
    loss2 = jax.block_until_ready(
        lmcl_loss(y_pred2, y_true2, scale=2.0, margin=0.35, block_batch=16))
    ref2 = _reference(y_pred2, y_true2, scale=2.0, margin=0.35)
    assert jnp.allclose(loss2, ref2, atol=1e-4, rtol=1e-4), (loss2, ref2)

    # Test 3: auto batch tiling + class tiling with ragged tiles on BOTH axes
    # (20 rows / 8-row tiles, 300 classes / 128-class tiles -> online LSE path).
    batch3, class3 = 20, 300
    y_pred3 = jnp.tanh(jax.random.normal(k5, (batch3, class3), dtype=jnp.float32))
    y_true3 = jax.random.randint(k6, (batch3,), 0, class3, dtype=jnp.int32)
    loss3 = jax.block_until_ready(
        lmcl_loss(y_pred3, y_true3, scale=2.0, margin=0.35, block_class=128))
    ref3 = _reference(y_pred3, y_true3, scale=2.0, margin=0.35)
    assert jnp.allclose(loss3, ref3, atol=1e-5, rtol=1e-5), (loss3, ref3)

    print("KERNEL_OK")
</pallas_src>

<mosaic_0001>
module attributes {stable_mosaic.version = 11 : i64} {
  func.func @_lmcl_kernel(%arg0: i32, %arg1: i32, %arg2: memref<8x256xf32, #tpu.memory_space<vmem>>, %arg3: memref<8x1xi32, #tpu.memory_space<vmem>>, %arg4: memref<8x128xf32, #tpu.memory_space<vmem>>, %arg5: memref<8x1xf32, #tpu.memory_space<vmem>>, %arg6: memref<8x1xf32, #tpu.memory_space<vmem>>, %arg7: memref<8x1xf32, #tpu.memory_space<vmem>>) attributes {dimension_semantics = [#tpu.dimension_semantics<parallel>, #tpu.dimension_semantics<arbitrary>], iteration_bounds = array<i64: 3, 1>, scalar_prefetch = 0 : i64, scratch_operands = 3 : i64, tpu.core_type = #tpu.core_type<tc>, window_params = [{transform_indices = @transform_0, window_bounds = array<i64: 8, 256>}, {transform_indices = @transform_1, window_bounds = array<i64: 8, 1>}, {transform_indices = @transform_2, window_bounds = array<i64: 8, 128>}]} {
    %c0_i32 = arith.constant 0 : i32
    %0 = arith.cmpi eq, %arg1, %c0_i32 : i32
    %1 = arith.extui %0 : i1 to i32
    %c0_i32_0 = arith.constant 0 : i32
    %2 = arith.cmpi ne, %1, %c0_i32_0 : i32
    scf.if %2 {
      %cst_23 = arith.constant 0xFF800000 : f32
      %42 = vector.broadcast %cst_23 : f32 to vector<8x1xf32>
      %c0_24 = arith.constant 0 : index
      %c0_25 = arith.constant 0 : index
      %43 = vector.load %arg5[%c0_24, %c0_25] : memref<8x1xf32, #tpu.memory_space<vmem>>, vector<8x1xf32>
      tpu.vector_store %arg5[%c0_24, %c0_25], %42 {strides = array<i32>} : memref<8x1xf32, #tpu.memory_space<vmem>>, vector<8x1xf32>,
      %cst_26 = arith.constant 0.000000e+00 : f32
      %44 = vector.broadcast %cst_26 : f32 to vector<8x1xf32>
      %c0_27 = arith.constant 0 : index
      %c0_28 = arith.constant 0 : index
      %45 = vector.load %arg6[%c0_27, %c0_28] : memref<8x1xf32, #tpu.memory_space<vmem>>, vector<8x1xf32>
      tpu.vector_store %arg6[%c0_27, %c0_28], %44 {strides = array<i32>} : memref<8x1xf32, #tpu.memory_space<vmem>>, vector<8x1xf32>,
      %cst_29 = arith.constant 0.000000e+00 : f32
      %46 = vector.broadcast %cst_29 : f32 to vector<8x1xf32>
      %c0_30 = arith.constant 0 : index
      %c0_31 = arith.constant 0 : index
      %47 = vector.load %arg7[%c0_30, %c0_31] : memref<8x1xf32, #tpu.memory_space<vmem>>, vector<8x1xf32>
      tpu.vector_store %arg7[%c0_30, %c0_31], %46 {strides = array<i32>} : memref<8x1xf32, #tpu.memory_space<vmem>>, vector<8x1xf32>,
    } else {
    }
    %c0 = arith.constant 0 : index
    %c0_1 = arith.constant 0 : index
    %3 = vector.load %arg2[%c0, %c0_1] : memref<8x256xf32, #tpu.memory_space<vmem>>, vector<8x256xf32>
    %c0_2 = arith.constant 0 : index
    %c0_3 = arith.constant 0 : index
    %4 = vector.load %arg3[%c0_2, %c0_3] : memref<8x1xi32, #tpu.memory_space<vmem>>, vector<8x1xi32>
    %5 = tpu.iota {dimensions = array<i32: 1>} : vector<8x256xi32>
    %c256_i32 = arith.constant 256 : i32
    %6 = arith.muli %arg1, %c256_i32 : i32
    %7 = vector.broadcast %6 : i32 to vector<8x1xi32>
    %8 = arith.subi %4, %7 : vector<8x1xi32>
    %9 = vector.broadcast %8 : vector<8x1xi32> to vector<8x256xi32>
    %10 = arith.cmpi eq, %5, %9 : vector<8x256xi32>
    %cst = arith.constant 3.500000e-01 : f32
    %11 = vector.broadcast %cst : f32 to vector<8x256xf32>
    %12 = arith.subf %3, %11 : vector<8x256xf32>
    %13 = arith.select %10, %12, %3 : vector<8x256xi1>, vector<8x256xf32>
    %cst_4 = arith.constant 2.000000e+00 : f32
    %14 = vector.broadcast %cst_4 : f32 to vector<8x256xf32>
    %15 = arith.mulf %14, %13 : vector<8x256xf32>
    %c0_5 = arith.constant 0 : index
    %c0_6 = arith.constant 0 : index
    %16 = vector.load %arg7[%c0_5, %c0_6] : memref<8x1xf32, #tpu.memory_space<vmem>>, vector<8x1xf32>
    %cst_7 = arith.constant 0.000000e+00 : f32
    %17 = vector.broadcast %cst_7 : f32 to vector<8x256xf32>
    %18 = arith.select %10, %15, %17 : vector<8x256xi1>, vector<8x256xf32>
    %cst_8 = arith.constant dense<0.000000e+00> : vector<8xf32>
    %19 = vector.multi_reduction <add>, %18, %cst_8 [1] : vector<8x256xf32> to vector<8xf32>
    %20 = vector.shape_cast %19 : vector<8xf32> to vector<8x1xf32>
    %21 = arith.addf %16, %20 : vector<8x1xf32>
    %c0_9 = arith.constant 0 : index
    %c0_10 = arith.constant 0 : index
    %22 = vector.load %arg7[%c0_9, %c0_10] : memref<8x1xf32, #tpu.memory_space<vmem>>, vector<8x1xf32>
    tpu.vector_store %arg7[%c0_9, %c0_10], %21 {strides = array<i32>} : memref<8x1xf32, #tpu.memory_space<vmem>>, vector<8x1xf32>,
    %c0_11 = arith.constant 0 : index
    %c0_12 = arith.constant 0 : index
    %23 = vector.load %arg5[%c0_11, %c0_12] : memref<8x1xf32, #tpu.memory_space<vmem>>, vector<8x1xf32>
    %cst_13 = arith.constant dense<0xFF800000> : vector<8xf32>
    %24 = vector.multi_reduction <maximumf>, %15, %cst_13 [1] : vector<8x256xf32> to vector<8xf32>
    %25 = vector.shape_cast %24 : vector<8xf32> to vector<8x1xf32>
    %26 = arith.maximumf %23, %25 : vector<8x1xf32>
    %27 = arith.subf %23, %26 : vector<8x1xf32>
    %28 = math.exp %27 : vector<8x1xf32>
    %c0_14 = arith.constant 0 : index
    %c0_15 = arith.constant 0 : index
    %29 = vector.load %arg6[%c0_14, %c0_15] : memref<8x1xf32, #tpu.memory_space<vmem>>, vector<8x1xf32>
    %30 = arith.mulf %28, %29 : vector<8x1xf32>
    %31 = vector.broadcast %26 : vector<8x1xf32> to vector<8x256xf32>
    %32 = arith.subf %15, %31 : vector<8x256xf32>
    %33 = math.exp %32 : vector<8x256xf32>
    %cst_16 = arith.constant dense<0.000000e+00> : vector<8xf32>
    %34 = vector.multi_reduction <add>, %33, %cst_16 [1] : vector<8x256xf32> to vector<8xf32>
    %35 = vector.shape_cast %34 : vector<8xf32> to vector<8x1xf32>
    %36 = arith.addf %30, %35 : vector<8x1xf32>
    %c0_17 = arith.constant 0 : index
    %c0_18 = arith.constant 0 : index
    %37 = vector.load %arg6[%c0_17, %c0_18] : memref<8x1xf32, #tpu.memory_space<vmem>>, vector<8x1xf32>
    tpu.vector_store %arg6[%c0_17, %c0_18], %36 {strides = array<i32>} : memref<8x1xf32, #tpu.memory_space<vmem>>, vector<8x1xf32>,
    %c0_19 = arith.constant 0 : index
    %c0_20 = arith.constant 0 : index
    %38 = vector.load %arg5[%c0_19, %c0_20] : memref<8x1xf32, #tpu.memory_space<vmem>>, vector<8x1xf32>
    tpu.vector_store %arg5[%c0_19, %c0_20], %26 {strides = array<i32>} : memref<8x1xf32, #tpu.memory_space<vmem>>, vector<8x1xf32>,
    %c0_i32_21 = arith.constant 0 : i32
    %39 = arith.cmpi eq, %arg1, %c0_i32_21 : i32
    %40 = arith.extui %39 : i1 to i32
    %c0_i32_22 = arith.constant 0 : i32
    %41 = arith.cmpi ne, %40, %c0_i32_22 : i32
    scf.if %41 {
      %c0_23 = arith.constant 0 : index
      %c0_24 = arith.constant 0 : index
      %42 = vector.load %arg5[%c0_23, %c0_24] : memref<8x1xf32, #tpu.memory_space<vmem>>, vector<8x1xf32>
      %c0_25 = arith.constant 0 : index
      %c0_26 = arith.constant 0 : index
      %43 = vector.load %arg6[%c0_25, %c0_26] : memref<8x1xf32, #tpu.memory_space<vmem>>, vector<8x1xf32>
      %44 = math.log %43 : vector<8x1xf32>
      %45 = arith.addf %42, %44 : vector<8x1xf32>
      %c0_27 = arith.constant 0 : index
      %c0_28 = arith.constant 0 : index
      %46 = vector.load %arg7[%c0_27, %c0_28] : memref<8x1xf32, #tpu.memory_space<vmem>>, vector<8x1xf32>
      %47 = arith.subf %45, %46 : vector<8x1xf32>
      %48 = tpu.iota {dimensions = array<i32: 0>} : vector<8x1xi32>
      %c8_i32 = arith.constant 8 : i32
      %49 = arith.muli %arg0, %c8_i32 : i32
      %50 = vector.broadcast %49 : i32 to vector<8x1xi32>
      %51 = arith.addi %50, %48 : vector<8x1xi32>
      %c24_i32 = arith.constant 24 : i32
      %52 = vector.broadcast %c24_i32 : i32 to vector<8x1xi32>
      %53 = arith.cmpi slt, %51, %52 : vector<8x1xi32>
      %cst_29 = arith.constant 0.000000e+00 : f32
      %54 = vector.broadcast %cst_29 : f32 to vector<8x1xf32>
      %55 = arith.select %53, %47, %54 : vector<8x1xi1>, vector<8x1xf32>
      %56 = vector.shape_cast %55 : vector<8x1xf32> to vector<1x8x1xf32>
      %cst_30 = arith.constant dense<0.000000e+00> : vector<1xf32>
      %57 = vector.multi_reduction <add>, %56, %cst_30 [1, 2] : vector<1x8x1xf32> to vector<1xf32>
      %58 = vector.shape_cast %57 : vector<1xf32> to vector<1x1x1xf32>
      %59 = vector.extract %58[0, 0, 0] : f32 from vector<1x1x1xf32>
      %60 = tpu.iota {dimensions = array<i32: 0>} : vector<8x128xi32>
      %61 = tpu.iota {dimensions = array<i32: 1>} : vector<8x128xi32>
      %c0_i32_31 = arith.constant 0 : i32
      %62 = vector.broadcast %c0_i32_31 : i32 to vector<8x128xi32>
      %63 = arith.cmpi eq, %60, %62 : vector<8x128xi32>
      %c0_i32_32 = arith.constant 0 : i32
      %64 = vector.broadcast %c0_i32_32 : i32 to vector<8x128xi32>
      %65 = arith.cmpi eq, %61, %64 : vector<8x128xi32>
      %66 = arith.andi %63, %65 : vector<8x128xi1>
      %cst_33 = arith.constant 0.000000e+00 : f32
      %67 = vector.broadcast %59 : f32 to vector<8x128xf32>
      %68 = vector.broadcast %cst_33 : f32 to vector<8x128xf32>
      %69 = arith.select %66, %67, %68 : vector<8x128xi1>, vector<8x128xf32>
      %c0_34 = arith.constant 0 : index
      %c0_35 = arith.constant 0 : index
      %70 = vector.load %arg4[%c0_34, %c0_35] : memref<8x128xf32, #tpu.memory_space<vmem>>, vector<8x128xf32>
      tpu.vector_store %arg4[%c0_34, %c0_35], %69 {strides = array<i32>} : memref<8x128xf32, #tpu.memory_space<vmem>>, vector<8x128xf32>,
    } else {
    }
    return
  }
  func.func @transform_0(%arg0: i32, %arg1: i32) -> (i32, i32) {
    %c0_i32 = arith.constant 0 : i32
    return %arg0, %arg1 : i32, i32
  }
  func.func @transform_1(%arg0: i32, %arg1: i32) -> (i32, i32) {
    %c0_i32 = arith.constant 0 : i32
    %c0_i32_0 = arith.constant 0 : i32
    return %arg0, %c0_i32 : i32, i32
  }
  func.func @transform_2(%arg0: i32, %arg1: i32) -> (i32, i32) {
    %c0_i32 = arith.constant 0 : i32
    %c0_i32_0 = arith.constant 0 : i32
    return %arg0, %c0_i32 : i32, i32
  }
}

</mosaic_0001>

<llo_original>
// kernel: tpu_custom_call.1
$region0: #{tpu_custom_call.1}
  #allocation0 [shape = 'u32[]', space=smem, size = 0x4, offset = 0x4, fixed_abs, tag = 'smem constant byte address 0x4 - core index']
  #allocation1 [shape = 'u32[144,128]{1,0:T(1,128)}', space=vmem, size = 0x12000, scoped, tag = 'internal scratch']
  #allocation2 [shape = 'f32[8,1]{1,0:T(8,128)}', space=vmem, size = 0x1000, scoped, tag = 'scratch operand']
  #allocation3 [shape = 'f32[8,1]{1,0:T(8,128)}', space=vmem, size = 0x1000, scoped, tag = 'scratch operand']
  #allocation4 [shape = 'f32[8,1]{1,0:T(8,128)}', space=vmem, size = 0x1000, scoped, tag = 'scratch operand']
  %s0 = inlined_call_operand.hbm [shape: f32[24,256], index: 0, kind: input, shape index: {}]
  %s1 = inlined_call_operand.vmem [shape: s32[24,1], index: 1, kind: input, shape index: {}]
  %s2 = inlined_call_operand.hbm [shape: f32[24,128], index: 2, kind: output, shape index: {}]
  %s3 = sld [smem:[#allocation0]]
  $region53: #{tpu_custom_call.1} parent=0
    _
  %s5 = ssub.s32 1, %s3
  %s6 = scalar_select 0, %s5, %s3
  $region1: #{tpu_custom_call.1} parent=0
    #allocation5 [shape = 'u8[16384]{0}', space=vmem, size = 0x4000, scoped, tag = 'input window, operand 0']
    #allocation6 [shape = 's32[2]{0}', space=sflag, size = 0x8, scoped, tag = 'scoped memory for tpu_custom_call.1']
    #allocation7 [shape = 's32[2]{0}', space=sflag, size = 0x8, scoped, tag = 'scoped memory for tpu_custom_call.1']
    #allocation8 [shape = 'u8[8192]{0}', space=vmem, size = 0x2000, scoped, tag = 'output window, operand 0']
    %7 = vsyncpa [#allocation6], 0
    %s8 = scalar_lea.sflag [#allocation6], 1
    %9 = vsyncpa %s8, 0
    %10 = vsyncpa [#allocation7], 0
    %s11 = scalar_lea.sflag [#allocation7], 1
    %12 = vsyncpa %s11, 0
    loop: start=0, step=1, limit=5
    $region2: #{tpu_custom_call.1} parent=1 // loop_pre_header
      _
    $region3: #{tpu_custom_call.1} parent=1 // loop_header
      %s14 = sphi 0, %s18
      %p15 = scmp.ge.s32.totalorder %s14, 5
      %s21 = sphi 0, %s33
      %s22 = sphi 0, %s29
      %s23 = sphi 0, %s21
      %s24 = sphi 0, %s22
      %s25 = sphi 0, %s23
      %s26 = sphi 0, %s24
      %s38 = sphi 0, %s40
      %s41 = sphi 0, %s38
      %s42 = sphi 0, %s41
      %s58 = sphi 0, %s42
      %s64 = sphi 0, %s66
      %s67 = sphi 0, %s64
      %s68 = sphi 0, %s67
      %s84 = sphi 0, %s68
      %s90 = sphi 0, %s92
      %s93 = sphi 0, %s90
      %s94 = sphi 0, %s93
      %s110 = sphi 0, %s94
    $region4: #{tpu_custom_call.1} parent=1 // loop_header_branch
      %17 = sbr.rel (%p15) target = $region8
    $region5: #{tpu_custom_call.1} parent=1 // loop_body
      %s19 = ssub.s32 %s14, 1
      %s20 = ssub.s32 %s14, 2
      %s27 = sadd.s32 1, %s22
      %p28 = scmp.ge.s32.totalorder %s27, 1
      %s29 = scalar_select %p28, 0, %s27
      %s30 = sadd.s32 1, %s21
      %s31 = scalar_select %p28, %s30, %s21
      %p32 = scmp.ge.s32.totalorder %s31, 3
      %s33 = scalar_select %p32, 0, %s31
      %s34 = ssub.s32 %s21, %s33
      %s35 = ssub.s32 %s22, %s29
      %s36 = sor.u32 %s34, %s35
      %p37 = scmp.eq.s32.totalorder %s36, 0
      %s39 = sadd.s32 %s38, 1
      %s40 = scalar_select %p37, %s38, %s39
      %p43 = pneg %p37
      %p44 = scmp.eq.s32.totalorder %s14, 2
      %p45 = por %p43, %p44
      %p46 = scmp.ne.s32.totalorder %s38, %s41
      %p47 = scmp.eq.s32.totalorder %s14, 0
      %p48 = por %p46, %p47
      %p49 = scmp.ne.s32.totalorder %s38, %s41
      %p50 = scmp.eq.s32.totalorder %s19, 2
      %p51 = por %p49, %p50
      %p52 = scmp.ne.s32.totalorder %s41, %s42
      %p53 = scmp.eq.s32.totalorder %s19, 0
      %p54 = por %p52, %p53
      %p55 = scmp.ne.s32.totalorder %s41, %s42
      %p56 = scmp.eq.s32.totalorder %s20, 2
      %p57 = por %p55, %p56
      %p59 = scmp.ne.s32.totalorder %s42, %s58
      %p60 = scmp.eq.s32.totalorder %s20, 0
      %p61 = por %p59, %p60
      %s62 = ssub.s32 %s21, %s33
      %p63 = scmp.eq.s32.totalorder %s62, 0
      %s65 = sadd.s32 %s64, 1
      %s66 = scalar_select %p63, %s64, %s65
      %p69 = pneg %p63
      %p70 = scmp.eq.s32.totalorder %s14, 2
      %p71 = por %p69, %p70
      %p72 = scmp.ne.s32.totalorder %s64, %s67
      %p73 = scmp.eq.s32.totalorder %s14, 0
      %p74 = por %p72, %p73
      %p75 = scmp.ne.s32.totalorder %s64, %s67
      %p76 = scmp.eq.s32.totalorder %s19, 2
      %p77 = por %p75, %p76
      %p78 = scmp.ne.s32.totalorder %s67, %s68
      %p79 = scmp.eq.s32.totalorder %s19, 0
      %p80 = por %p78, %p79
      %p81 = scmp.ne.s32.totalorder %s67, %s68
      %p82 = scmp.eq.s32.totalorder %s20, 2
      %p83 = por %p81, %p82
      %p85 = scmp.ne.s32.totalorder %s68, %s84
      %p86 = scmp.eq.s32.totalorder %s20, 0
      %p87 = por %p85, %p86
      %s88 = ssub.s32 %s21, %s33
      %p89 = scmp.eq.s32.totalorder %s88, 0
      %s91 = sadd.s32 %s90, 1
      %s92 = scalar_select %p89, %s90, %s91
      %p95 = pneg %p89
      %p96 = scmp.eq.s32.totalorder %s14, 2
      %p97 = por %p95, %p96
      %p98 = scmp.ne.s32.totalorder %s90, %s93
      %p99 = scmp.eq.s32.totalorder %s14, 0
      %p100 = por %p98, %p99
      %p101 = scmp.ne.s32.totalorder %s90, %s93
      %p102 = scmp.eq.s32.totalorder %s19, 2
      %p103 = por %p101, %p102
      %p104 = scmp.ne.s32.totalorder %s93, %s94
      %p105 = scmp.eq.s32.totalorder %s19, 0
      %p106 = por %p104, %p105
      %p107 = scmp.ne.s32.totalorder %s93, %s94
      %p108 = scmp.eq.s32.totalorder %s20, 2
      %p109 = por %p107, %p108
      %p111 = scmp.ne.s32.totalorder %s94, %s110
      %p112 = scmp.eq.s32.totalorder %s20, 0
      %p113 = por %p111, %p112
      %p114 = scmp.le.s32.totalorder 1, %s14
      %p115 = scmp.lt.s32.totalorder %s14, 4
      %p116 = pnand %p114, %p115
      %p117 = pneg %p116
      // Predicated region
      $region9: #{tpu_custom_call.1} parent=5 // pred_check
        _
      $region10: #{tpu_custom_call.1} parent=5 // pred_check_branch
        %119 = sbr.rel (%p116) target = $region12
      $region11: #{tpu_custom_call.1} parent=5 // pred_region
        %s120 = ssub.s32 %s14, 1
      $region12: #{tpu_custom_call.1} parent=5 // pred_fallthru
        _
      %p121 = scmp.lt.s32.totalorder %s14, 3
      // Predicated region
      $region13: #{tpu_custom_call.1} parent=5 // pred_check
        %p122 = pneg %p121
      $region14: #{tpu_custom_call.1} parent=5 // pred_check_branch
        %124 = sbr.rel (%p122) target = $region16
      $region15: #{tpu_custom_call.1} parent=5 // pred_region
        // Predicated region
        $region17: #{tpu_custom_call.1} parent=15 // pred_check
          %p125 = pneg %p48
        $region18: #{tpu_custom_call.1} parent=15 // pred_check_branch
          %127 = sbr.rel (%p125) target = $region20
        $region19: #{tpu_custom_call.1} parent=15 // pred_region
          %s128 = sand.u32 %s38, 1
          %s129 = scalar_lea.sflag [#allocation6], %s128
          %s130 = sand.u32 %s38, 1
          %s131 = smul.addr %s130, 16
          %s132 = scalar_lea.vmem [#allocation5], %s131
          %s133 = smul.u32 2, %s22
          %s135 = ssub.s32 256, 256
          %136 = vsyncadd %s129, %s135
          %s137 = smul.addr %s21, 2
          %s138 = sadd.s32 %s133, %s137
          %s139 = smul.addr %s138, 128
          %s140 = scalar_lea.hbm %s0, %s139
          %s142 = sshll.u32 %s132, 4
          %s143 = int_to_ptr.vmem [resolvable:$true] %s142
          %145 = dma.hbm_to_vmem [thread:$0]  %s140, 256, %s143, %s129
        $region20: #{tpu_custom_call.1} parent=15 // pred_fallthru
          _
        // Predicated region
        $region21: #{tpu_custom_call.1} parent=15 // pred_check
          %p146 = pneg %p74
        $region22: #{tpu_custom_call.1} parent=15 // pred_check_branch
          %148 = sbr.rel (%p146) target = $region24
        $region23: #{tpu_custom_call.1} parent=15 // pred_region
          %p149 = scmp.lt.s32.totalorder %s21, 2
          %s150 = scalar_select %p149, %s21, 2
          %s151 = smul.addr %s150, 8
          %s152 = scalar_lea.vmem %s1, %s151
        $region24: #{tpu_custom_call.1} parent=15 // pred_fallthru
          _
      $region16: #{tpu_custom_call.1} parent=5 // pred_fallthru
        _
      %p153 = scmp.le.s32.totalorder 1, %s14
      %p154 = scmp.lt.s32.totalorder %s14, 4
      %p155 = pnand %p153, %p154
      %p156 = pneg %p155
      // Predicated region
      $region25: #{tpu_custom_call.1} parent=5 // pred_check
        _
      $region26: #{tpu_custom_call.1} parent=5 // pred_check_branch
        %158 = sbr.rel (%p155) target = $region28
      $region27: #{tpu_custom_call.1} parent=5 // pred_region
        %s159 = ssub.s32 %s14, 1
        %s160 = sand.u32 %s41, 1
        %s161 = scalar_lea.sflag [#allocation6], %s160
        %s162 = sand.u32 %s41, 1
        %s163 = smul.addr %s162, 16
        %s164 = scalar_lea.vmem [#allocation5], %s163
        // Predicated region
        $region29: #{tpu_custom_call.1} parent=27 // pred_check
          %p165 = pneg %p54
        $region30: #{tpu_custom_call.1} parent=27 // pred_check_branch
          %167 = sbr.rel (%p165) target = $region32
        $region31: #{tpu_custom_call.1} parent=27 // pred_region
          %168 = dma.done %s161, 256
        $region32: #{tpu_custom_call.1} parent=27 // pred_fallthru
          _
        %s169 = sand.u32 %s41, 1
        %s170 = scalar_lea.sflag [#allocation6], %s169
        %s171 = sand.u32 %s41, 1
        %s172 = smul.addr %s171, 16
        %s173 = scalar_lea.vmem [#allocation5], %s172
        %p174 = pneg %p54
        %p175 = pneg %p51
        %p176 = scmp.lt.s32.totalorder %s23, 2
        %s177 = scalar_select %p176, %s23, 2
        %s178 = smul.addr %s177, 8
        %s179 = scalar_lea.vmem %s1, %s178
        %p180 = pneg %p80
        %p181 = pneg %p77
        %p182 = pneg %p106
        %p183 = pneg %p103
        %s184 = sand.u32 %s93, 1
        %s185 = scalar_lea.sflag [#allocation7], %s184
        %s186 = sand.u32 %s93, 1
        %s187 = smul.addr %s186, 8
        %s188 = scalar_lea.vmem [#allocation8], %s187
        %s189 = smul.u32 2, %s24
        %p190 = scmp.lt.s32.totalorder %s23, 2
        %s191 = scalar_select %p190, %s23, 2
        %s192 = smul.addr %s191, 8
        %s193 = scalar_lea.vmem %s1, %s192
        %p194 = scmp.eq.s32.totalorder %s24, 0
        // Predicated region
        $region33: #{tpu_custom_call.1} parent=27 // pred_check
          %p195 = pneg %p194
        $region34: #{tpu_custom_call.1} parent=27 // pred_check_branch
          %197 = sbr.rel (%p195) target = $region36
        $region35: #{tpu_custom_call.1} parent=27 // pred_region
          %vm198 = vcmask 7168
          %199 = vst.msk [vmem:[#allocation2] sm:$0xff] %vm198, -inf
          %200 = vst.msk [vmem:[#allocation3] sm:$0xff] %vm198, 0.0
          %201 = vst.msk [vmem:[#allocation4] sm:$0xff] %vm198, 0.0
        $region36: #{tpu_custom_call.1} parent=27 // pred_fallthru
          _
        %v202 = vld [vmem:[%s164] sm:$0xff]
        %v203 = vld [vmem:[%s164 + $0x8] sm:$0xff]
        %v204 = vld [vmem:[%s193] sm:$0xff]
        %v205 = vlaneseq
        %v206 = vand.u32 %v205, 127
        %v207 = vadd.s32 %v206, 128
        %s208 = smul.u32 %s24, 256
        %v209 = vstv %s208
        %v210 = vsub.s32 %v204, %v209
        %211 = vset.pattern.permute.xlu0 0
        %212 = vperm.xlu0 %211, %v210
        %v213 = vpop.permute.xlu0 %212
        %vm214 = vcmp.eq.s32.totalorder %v206, %v213
        %vm215 = vcmp.eq.s32.totalorder %v207, %v213
        %v216 = vsub.f32 %v202, 0.35
        %v217 = vsub.f32 %v203, 0.35
        %v218 = vsel %vm214, %v216, %v202
        %v219 = vsel %vm215, %v217, %v203
        %v220 = vmul.f32 %v218, 2.0
        %v221 = vmul.f32 %v219, 2.0
        %v222 = vld [vmem:[#allocation4] sm:$0xff]
        %v223 = vsel %vm214, %v220, 0.0
        %v224 = vsel %vm215, %v221, 0.0
        %v225 = vadd.f32 %v223, %v224
        %226 = vadd.xlane.f32.xlu0 %v225
        %v227 = vpop.xlane.xlu0 %226
        %v228 = vadd.f32 %v222, %v227
        %vm229 = vcmask 7168
        %230 = vst.msk [vmem:[#allocation4] sm:$0xff] %vm229, %v228
        %v231 = vld [vmem:[#allocation2] sm:$0xff]
        %v232 = vmax.f32 %v220, %v221
        %233 = vmax.xlane.f32.xlu0 %v232
        %v234 = vpop.xlane.xlu0 %233
        %v235 = vmax.f32 %v231, %v234
        %v236 = vsub.f32 %v231, %v235
        %v237 = vmul.f32 %v236, 1.442695
        %v238 = vpow.pop %v237
        %v239 = vld [vmem:[#allocation3] sm:$0xff]
        %v240 = vmul.f32 %v238, %v239
        %242 = vset.pattern.permute.xlu0 0
        %243 = vperm.xlu0 %242, %v235
        %v244 = vpop.permute.xlu0 %243
        %v246 = vsub.f32 %v220, %v244
        %v247 = vsub.f32 %v221, %v244
        %v248 = vmul.f32 %v246, 1.442695
        %v249 = vpow.pop %v248
        %v250 = vmul.f32 %v247, 1.442695
        %v251 = vpow.pop %v250
        %v252 = vadd.f32 %v249, %v251
        %253 = vadd.xlane.f32.xlu0 %v252
        %v254 = vpop.xlane.xlu0 %253
        %v255 = vadd.f32 %v240, %v254
        %256 = vst.msk [vmem:[#allocation3] sm:$0xff] %vm229, %v255
        %257 = vst.msk [vmem:[#allocation2] sm:$0xff] %vm229, %v235
        // Predicated region
        $region37: #{tpu_custom_call.1} parent=27 // pred_check
          %p258 = pneg %p194
        $region38: #{tpu_custom_call.1} parent=27 // pred_check_branch
          %260 = sbr.rel (%p258) target = $region40
        $region39: #{tpu_custom_call.1} parent=27 // pred_region
          %v261 = vld [vmem:[#allocation2] sm:$0xff]
          %v262 = vld [vmem:[#allocation3] sm:$0xff]
          %v263 = vlog2.pop %v262
          %v264 = vmul.f32 %v263, 0.6931472
          %v265 = vadd.f32 %v261, %v264
          %v266 = vld [vmem:[#allocation4] sm:$0xff]
          %v267 = vsub.f32 %v265, %v266
          %v268 = vlaneseq
          %v269 = vshrl.u32 %v268, 7
          %s270 = smul.u32 %s23, 8
          %v271 = vstv %s270
          %v272 = vadd.s32 %v271, %v269
          %vm273 = vcmp.lt.s32.totalorder %v272, 24
          %v274 = vsel %vm273, %v267, 0.0
          %v275 = vsel %vm229, %v274, 0.0
          %276 = vadd.xlane.f32.xlu0 %v275
          %v277 = vpop.xlane.xlu0 %276
          %v278 = vrot.slane %v277, 4
          %v279 = vadd.f32 %v277, %v278
          %v280 = vrot.slane %v279, 2
          %v281 = vadd.f32 %v279, %v280
          %v282 = vrot.slane %v281, 1
          %v283 = vadd.f32 %v281, %v282
          %s284 = vtos %v283
          %vm285 = vcmp.eq.s32.totalorder %v269, 0
          %vm286 = vcmp.eq.s32.totalorder %v206, 0
          %vm287 = vmand %vm285, %vm286
          %v288 = vstv %s284
          %v289 = vsel %vm287, %v288, 0.0
          %290 = vst [vmem:[%s188] sm:$0xff] %v289
        $region40: #{tpu_custom_call.1} parent=27 // pred_fallthru
          _
        %s291 = sand.u32 %s93, 1
        %s292 = scalar_lea.sflag [#allocation7], %s291
        %s293 = sand.u32 %s93, 1
        %s294 = smul.addr %s293, 8
        %s295 = scalar_lea.vmem [#allocation8], %s294
        // Predicated region
        $region41: #{tpu_custom_call.1} parent=27 // pred_check
          %p296 = pneg %p103
        $region42: #{tpu_custom_call.1} parent=27 // pred_check_branch
          %298 = sbr.rel (%p296) target = $region44
        $region43: #{tpu_custom_call.1} parent=27 // pred_region
          %s300 = ssub.s32 128, 128
          %301 = vsyncadd %s292, %s300
          %s302 = smul.addr %s23, 128
          %s303 = scalar_lea.hbm %s2, %s302
          %s305 = sshll.u32 %s295, 4
          %s306 = int_to_ptr.vmem [resolvable:$true] %s305
          %308 = dma.vmem_to_hbm [thread:$0]  %s306, 128, %s303, %s292
        $region44: #{tpu_custom_call.1} parent=27 // pred_fallthru
          _
      $region28: #{tpu_custom_call.1} parent=5 // pred_fallthru
        _
      %p309 = scmp.le.s32.totalorder 2, %s14
      // Predicated region
      $region45: #{tpu_custom_call.1} parent=5 // pred_check
        %p310 = pneg %p309
      $region46: #{tpu_custom_call.1} parent=5 // pred_check_branch
        %312 = sbr.rel (%p310) target = $region48
      $region47: #{tpu_custom_call.1} parent=5 // pred_region
        %s313 = ssub.s32 %s14, 2
        // Predicated region
        $region49: #{tpu_custom_call.1} parent=47 // pred_check
          %p314 = pneg %p109
        $region50: #{tpu_custom_call.1} parent=47 // pred_check_branch
          %316 = sbr.rel (%p314) target = $region52
        $region51: #{tpu_custom_call.1} parent=47 // pred_region
          %s317 = sand.u32 %s94, 1
          %s318 = scalar_lea.sflag [#allocation7], %s317
          %s319 = sand.u32 %s94, 1
          %s320 = smul.addr %s319, 8
          %s321 = scalar_lea.vmem [#allocation8], %s320
          %322 = dma.done %s318, 128
        $region52: #{tpu_custom_call.1} parent=47 // pred_fallthru
          _
      $region48: #{tpu_custom_call.1} parent=5 // pred_fallthru
        _
    $region6: #{tpu_custom_call.1} parent=1 // loop_footer
      %s18 = sadd.s32 1, %s14
    $region7: #{tpu_custom_call.1} parent=1 // loop_footer_branch
      %13 = sbr.rel target = $region3
    $region8: #{tpu_custom_call.1} parent=1 // loop_exit
      _
    %323 = vsyncpa [#allocation6], 1
    %s324 = scalar_lea.sflag [#allocation6], 1
    %325 = vsyncpa %s324, 1
    %326 = vsyncpa [#allocation7], 1
    %s327 = scalar_lea.sflag [#allocation7], 1
    %328 = vsyncpa %s327, 1

</llo_original>
